<compile_context>
chip_gen: v7x
topology: tpu7x:2x2x1
jax: 0.10.0
libtpu: 0.0.40
codegen_flags: <defaults>
</compile_context>

<pallas_src>
import functools

import jax
import jax.numpy as jnp
from jax.experimental import pallas as pl
from jax.experimental.pallas import tpu as pltpu


def _channel_shuffle_kernel(x_ref, o_ref, *, groups, cpg):
    # x_ref / o_ref: (b_tile, C, T) VMEM tiles, C = groups * cpg, T lane-dense.
    # out channel i*groups + j  <-  in channel j*cpg + i
    # => out viewed as (b, cpg, groups, T) is the in view (b, groups, cpg, T)
    #    with the two channel sub-axes swapped (lanes untouched).
    bt, c, t = x_ref.shape
    x = x_ref[...].reshape(bt, groups, cpg, t)
    o_ref[...] = jnp.transpose(x, (0, 2, 1, 3)).reshape(bt, c, t)


def _largest_divisor_leq(n: int, cap: int) -> int:
    cap = max(1, min(n, cap))
    for d in range(cap, 0, -1):
        if n % d == 0:
            return d
    return 1


def channel_shuffle_pallas(x: jax.Array, groups: int,
                           *, target_block_bytes: int = 2 << 20) -> jax.Array:
    """x: (B, C, H, W); returns channel-shuffled array, same shape/dtype."""
    B, C, H, W = x.shape
    if C % groups != 0:
        raise ValueError("channels must be divisible by groups")
    cpg = C // groups
    HW = H * W
    itemsize = jnp.dtype(x.dtype).itemsize
    slab_bytes = C * HW * itemsize  # one batch element, flattened

    if slab_bytes <= target_block_bytes:
        # Whole (C, HW) slab fits: pack several batch elements per block.
        hw_tile = HW
        b_cap = max(1, target_block_bytes // max(slab_bytes, 1))
        b_tile = _largest_divisor_leq(B, b_cap)
    else:
        # Tile the lane axis in multiples of 128 to ~target_block_bytes.
        b_tile = 1
        hw_tile = max(128, (target_block_bytes // (C * itemsize)) // 128 * 128)
        hw_tile = min(hw_tile, HW)  # if HW < 128 this equals the full dim

    x_flat = x.reshape(B, C, HW)
    grid = (pl.cdiv(B, b_tile), pl.cdiv(HW, hw_tile))

    kernel = functools.partial(_channel_shuffle_kernel, groups=groups, cpg=cpg)

    out = pl.pallas_call(
        kernel,
        out_shape=jax.ShapeDtypeStruct((B, C, HW), x.dtype),
        grid_spec=pltpu.PrefetchScalarGridSpec(
            num_scalar_prefetch=0,
            grid=grid,
            in_specs=[pl.BlockSpec((b_tile, C, hw_tile), lambda b, t: (b, 0, t))],
            out_specs=pl.BlockSpec((b_tile, C, hw_tile), lambda b, t: (b, 0, t)),
        ),
        compiler_params=pltpu.CompilerParams(
            # Pure permutation/copy: no reduction axis, shard freely across TCs.
            dimension_semantics=("parallel", "parallel"),
            # Headroom for MiB-scale double-buffered in/out blocks on all gens
            # (safe w.r.t. v7x's 64 MiB physical VMEM and v5e's defaults).
            vmem_limit_bytes=32 << 20,
        ),
    )(x_flat)

    return out.reshape(B, C, H, W)


def channel_shuffle_ref(x: jax.Array, groups: int) -> jax.Array:
    B, C, H, W = x.shape
    cpg = C // groups
    y = x.reshape(B, groups, cpg, H, W)
    y = jnp.transpose(y, (0, 2, 1, 3, 4))
    return y.reshape(B, C, H, W)


if __name__ == "__main__":
    key = jax.random.PRNGKey(0)
    B, C, H, W = 2, 8, 16, 16
    groups = 4
    x = jax.random.normal(key, (B, C, H, W), dtype=jnp.float32)

    y = channel_shuffle_pallas(x, groups)
    y = jax.block_until_ready(y)

    y_ref = channel_shuffle_ref(x, groups)
    assert y.shape == x.shape and y.dtype == x.dtype
    assert jnp.array_equal(y, y_ref), "mismatch vs reference channel shuffle"

    print("KERNEL_OK")
</pallas_src>

<mosaic_0001>
module attributes {stable_mosaic.version = 11 : i64} {
  func.func @_channel_shuffle_kernel(%arg0: i32, %arg1: i32, %arg2: memref<2x8x256xf32, #tpu.memory_space<vmem>>, %arg3: memref<2x8x256xf32, #tpu.memory_space<vmem>>) attributes {dimension_semantics = [#tpu.dimension_semantics<parallel>, #tpu.dimension_semantics<parallel>], iteration_bounds = array<i64: 1, 1>, scalar_prefetch = 0 : i64, scratch_operands = 0 : i64, tpu.core_type = #tpu.core_type<tc>, window_params = [{transform_indices = @transform_0, window_bounds = array<i64: 2, 8, 256>}, {transform_indices = @transform_1, window_bounds = array<i64: 2, 8, 256>}]} {
    %c0 = arith.constant 0 : index
    %c0_0 = arith.constant 0 : index
    %c0_1 = arith.constant 0 : index
    %0 = vector.load %arg2[%c0, %c0_0, %c0_1] : memref<2x8x256xf32, #tpu.memory_space<vmem>>, vector<2x8x256xf32>
    %1 = vector.shape_cast %0 : vector<2x8x256xf32> to vector<2x4x2x256xf32>
    %2 = tpu.transpose %1, [0, 2, 1, 3] : vector<2x4x2x256xf32> -> vector<2x2x4x256xf32>
    %3 = vector.shape_cast %2 : vector<2x2x4x256xf32> to vector<2x8x256xf32>
    %c0_2 = arith.constant 0 : index
    %c0_3 = arith.constant 0 : index
    %c0_4 = arith.constant 0 : index
    %4 = vector.load %arg3[%c0_2, %c0_3, %c0_4] : memref<2x8x256xf32, #tpu.memory_space<vmem>>, vector<2x8x256xf32>
    tpu.vector_store %arg3[%c0_2, %c0_3, %c0_4], %3 {strides = array<i32>} : memref<2x8x256xf32, #tpu.memory_space<vmem>>, vector<2x8x256xf32>,
    return
  }
  func.func @transform_0(%arg0: i32, %arg1: i32) -> (i32, i32, i32) {
    %c0_i32 = arith.constant 0 : i32
    %c0_i32_0 = arith.constant 0 : i32
    return %arg0, %c0_i32, %arg1 : i32, i32, i32
  }
  func.func @transform_1(%arg0: i32, %arg1: i32) -> (i32, i32, i32) {
    %c0_i32 = arith.constant 0 : i32
    %c0_i32_0 = arith.constant 0 : i32
    return %arg0, %c0_i32, %arg1 : i32, i32, i32
  }
}

</mosaic_0001>

<llo_original>
// kernel: tpu_custom_call.1
$region0: #{tpu_custom_call.1}
  #allocation0 [shape = 'u32[]', space=smem, size = 0x4, offset = 0x4, fixed_abs, tag = 'smem constant byte address 0x4 - core index']
  #allocation1 [shape = 'u32[144,128]{1,0:T(1,128)}', space=vmem, size = 0x12000, scoped, tag = 'internal scratch']
  %s0 = inlined_call_operand.hbm [shape: f32[2,8,256], index: 0, kind: input, shape index: {}]
  %s1 = inlined_call_operand.hbm [shape: f32[2,8,256], index: 1, kind: output, shape index: {}]
  %s2 = sld [smem:[#allocation0]]
  $region18: #{tpu_custom_call.1} parent=0
    _
  %s4 = ssub.s32 1, %s2
  %s5 = scalar_select 0, %s4, %s2
  $region1: #{tpu_custom_call.1} parent=0
    #allocation2 [shape = 'u8[16384]{0}', space=vmem, size = 0x4000, scoped, tag = 'input window, operand 0, single buffered']
    #allocation3 [shape = 's32[1]{0}', space=sflag, size = 0x4, scoped, tag = 'scoped memory for tpu_custom_call.1']
    #allocation4 [shape = 's32[1]{0}', space=sflag, size = 0x4, scoped, tag = 'scoped memory for tpu_custom_call.1']
    #allocation5 [shape = 'u8[16384]{0}', space=vmem, size = 0x4000, scoped, tag = 'output window, operand 0, single buffered']
    %6 = vsyncpa [#allocation3], 0
    %7 = vsyncpa [#allocation4], 0
    // Predicated region
    $region2: #{tpu_custom_call.1} parent=1 // pred_check
      _
    $region3: #{tpu_custom_call.1} parent=1 // pred_check_branch
      %9 = sbr.rel (0) target = $region5
    $region4: #{tpu_custom_call.1} parent=1 // pred_region
      %s11 = ssub.s32 512, 512
      %12 = vsyncadd [#allocation3], %s11
      %s13 = sshll.u32 [#allocation2], 4
      %s14 = int_to_ptr.vmem [resolvable:$true] %s13
      %19 = dma.hbm_to_vmem [thread:$0]  %s0, 512, %s14, [#allocation3], 256, 256, 16
    $region5: #{tpu_custom_call.1} parent=1 // pred_fallthru
      _
    // Predicated region
    $region6: #{tpu_custom_call.1} parent=1 // pred_check
      _
    $region7: #{tpu_custom_call.1} parent=1 // pred_check_branch
      %21 = sbr.rel (0) target = $region9
    $region8: #{tpu_custom_call.1} parent=1 // pred_region
      %22 = dma.done [#allocation3], 512
    $region9: #{tpu_custom_call.1} parent=1 // pred_fallthru
      _
    %v23 = vld [vmem:[#allocation2] sm:$0xff]
    %v24 = vld [vmem:[#allocation2 + $0x8] sm:$0xff]
    %v25 = vld [vmem:[#allocation2 + $0x10] sm:$0xff]
    %v26 = vld [vmem:[#allocation2 + $0x18] sm:$0xff]
    %v31 = vcombine.low %v23, %v24
    %v32 = vcombine.high %v23, %v24
    %v34 = vunpack.c.l.s4 1983009808
    %v35 = vunpack.c.0.s8 %v34
    %v36 = vlaneseq
    %v37 = vshrl.u32 %v36, 7
    %v38 = vsub.s32 %v35, %v37
    %v39 = vrot.slane %v31, %v38
    %v41 = vunpack.c.l.s4 1983009808
    %v42 = vunpack.c.0.s8 %v41
    %v43 = vlaneseq
    %v44 = vshrl.u32 %v43, 7
    %v45 = vsub.s32 %v42, %v44
    %v46 = vrot.slane %v32, %v45
    %v47 = vcombine.high %v39, %v39
    %v48 = vcombine.high %v46, %v46
    %v49 = vcombine.low %v25, %v26
    %v50 = vcombine.high %v25, %v26
    %v52 = vunpack.c.l.s4 1983009808
    %v53 = vunpack.c.0.s8 %v52
    %v54 = vlaneseq
    %v55 = vshrl.u32 %v54, 7
    %v56 = vsub.s32 %v53, %v55
    %v57 = vrot.slane %v49, %v56
    %v59 = vunpack.c.l.s4 1983009808
    %v60 = vunpack.c.0.s8 %v59
    %v61 = vlaneseq
    %v62 = vshrl.u32 %v61, 7
    %v63 = vsub.s32 %v60, %v62
    %v64 = vrot.slane %v50, %v63
    %v65 = vcombine.high %v57, %v57
    %v66 = vcombine.high %v64, %v64
    %v75 = vcombine.low %v39, %v47
    %v77 = vunpack.c.l.s4 1934713408
    %v78 = vunpack.c.0.s8 %v77
    %v79 = vlaneseq
    %v80 = vshrl.u32 %v79, 7
    %v81 = vsub.s32 %v78, %v80
    %v82 = vrot.slane %v75, %v81
    %v83 = vcombine.high %v82, 0.0
    %v84 = vcombine.low %v46, %v48
    %v86 = vunpack.c.l.s4 1934713408
    %v87 = vunpack.c.0.s8 %v86
    %v88 = vlaneseq
    %v89 = vshrl.u32 %v88, 7
    %v90 = vsub.s32 %v87, %v89
    %v91 = vrot.slane %v84, %v90
    %v92 = vcombine.high %v91, 0.0
    %v93 = vcombine.low %v57, %v65
    %v95 = vunpack.c.l.s4 1934713408
    %v96 = vunpack.c.0.s8 %v95
    %v97 = vlaneseq
    %v98 = vshrl.u32 %v97, 7
    %v99 = vsub.s32 %v96, %v98
    %v100 = vrot.slane %v93, %v99
    %v101 = vcombine.high %v100, 0.0
    %v102 = vcombine.low %v64, %v66
    %v104 = vunpack.c.l.s4 1934713408
    %v105 = vunpack.c.0.s8 %v104
    %v106 = vlaneseq
    %v107 = vshrl.u32 %v106, 7
    %v108 = vsub.s32 %v105, %v107
    %v109 = vrot.slane %v102, %v108
    %v110 = vcombine.high %v109, 0.0
    %v119 = vcombine.low %v82, %v91
    %v120 = vcombine.low %v83, %v92
    %v122 = vunpack.c.l.s4 1983009808
    %v123 = vunpack.c.0.s8 %v122
    %v124 = vlaneseq
    %v125 = vshrl.u32 %v124, 7
    %v126 = vsub.s32 %v123, %v125
    %v127 = vrot.slane %v119, %v126
    %v129 = vunpack.c.l.s4 1983009808
    %v130 = vunpack.c.0.s8 %v129
    %v131 = vlaneseq
    %v132 = vshrl.u32 %v131, 7
    %v133 = vsub.s32 %v130, %v132
    %v134 = vrot.slane %v120, %v133
    %v135 = vcombine.low %v127, %v134
    %v136 = vcombine.high %v127, %v134
    %v137 = vcombine.low %v100, %v109
    %v138 = vcombine.low %v101, %v110
    %v140 = vunpack.c.l.s4 1983009808
    %v141 = vunpack.c.0.s8 %v140
    %v142 = vlaneseq
    %v143 = vshrl.u32 %v142, 7
    %v144 = vsub.s32 %v141, %v143
    %v145 = vrot.slane %v137, %v144
    %v147 = vunpack.c.l.s4 1983009808
    %v148 = vunpack.c.0.s8 %v147
    %v149 = vlaneseq
    %v150 = vshrl.u32 %v149, 7
    %v151 = vsub.s32 %v148, %v150
    %v152 = vrot.slane %v138, %v151
    %v153 = vcombine.low %v145, %v152
    %v154 = vcombine.high %v145, %v152
    %159 = vst [vmem:[#allocation5] sm:$0xff] %v135
    %160 = vst [vmem:[#allocation5 + $0x8] sm:$0xff] %v136
    %161 = vst [vmem:[#allocation5 + $0x10] sm:$0xff] %v153
    %162 = vst [vmem:[#allocation5 + $0x18] sm:$0xff] %v154
    // Predicated region
    $region10: #{tpu_custom_call.1} parent=1 // pred_check
      _
    $region11: #{tpu_custom_call.1} parent=1 // pred_check_branch
      %164 = sbr.rel (0) target = $region13
    $region12: #{tpu_custom_call.1} parent=1 // pred_region
      %s166 = ssub.s32 512, 512
      %167 = vsyncadd [#allocation4], %s166
      %s168 = sshll.u32 [#allocation5], 4
      %s169 = int_to_ptr.vmem [resolvable:$true] %s168
      %174 = dma.vmem_to_hbm [thread:$0]  %s169, 512, %s1, [#allocation4], 256, 256, 16
    $region13: #{tpu_custom_call.1} parent=1 // pred_fallthru
      _
    // Predicated region
    $region14: #{tpu_custom_call.1} parent=1 // pred_check
      _
    $region15: #{tpu_custom_call.1} parent=1 // pred_check_branch
      %176 = sbr.rel (0) target = $region17
    $region16: #{tpu_custom_call.1} parent=1 // pred_region
      %177 = dma.done [#allocation4], 512
    $region17: #{tpu_custom_call.1} parent=1 // pred_fallthru
      _
    %178 = vsyncpa [#allocation3], 1
    %179 = vsyncpa [#allocation4], 1

</llo_original>
